<compile_context>
chip_gen: v6e
topology: v6e:2x2x1
jax: 0.10.0
libtpu: 0.0.40
codegen_flags: <defaults>
</compile_context>

<pallas_src>
import functools

import jax
import jax.numpy as jnp
from jax.experimental import pallas as pl
from jax.experimental.pallas import tpu as pltpu


def _channel_gate_kernel(x_ref, w1t_ref, b1_ref, w2_ref, b2_ref, o_ref, *,
                         inv_hw):
    # x_ref block: (TB, C, HW) for TB batch elements.

    # ---- Squeeze: per-(b, c) spatial mean, streamed directly from the ref.
    # (No full-slab f32 temporary kept live; the cast fuses into the reduce.)
    s = jnp.sum(x_ref[...].astype(jnp.float32), axis=2) * inv_hw     # (TB, C)

    # ---- Tiny FC gate on VPU/XLU (MXU buys nothing at C x C//r size). ----
    w1t = w1t_ref[...].astype(jnp.float32)                           # (C, mid)
    w2 = w2_ref[...].astype(jnp.float32)                             # (C, mid)
    b1 = b1_ref[...].astype(jnp.float32)                             # (1, mid)
    b2 = b2_ref[...].astype(jnp.float32)                             # (1, C)

    # fc1 (C -> mid) + ReLU:  h[b,m] = sum_c s[b,c] * w1t[c,m] + b1[m]
    h = jnp.sum(s[:, :, None] * w1t[None, :, :], axis=1)             # (TB, mid)
    h = jnp.maximum(h + b1, 0.0)

    # fc2 (mid -> C) + sigmoid:  g[b,c] = sum_m h[b,m] * w2[c,m] + b2[c]
    g = jnp.sum(h[:, None, :] * w2[None, :, :], axis=2)              # (TB, C)
    g = jax.nn.sigmoid(g + b2)

    # ---- Excite: re-read x from VMEM (vld is cheap) and scale per channel.
    # bf16 excite path halves the packed-vreg VALU work on v6e/v7x; keep f32
    # for everything else (and f32 inputs match the reference exactly).
    excite_dtype = o_ref.dtype if o_ref.dtype == jnp.bfloat16 else jnp.float32
    gb = g.astype(excite_dtype)[:, :, None]                          # (TB, C, 1)
    o_ref[...] = (x_ref[...].astype(excite_dtype) * gb).astype(o_ref.dtype)


def channel_gate_2d(x, fc1_w, fc1_b, fc2_w, fc2_b, *,
                    target_block_bytes=2 * 1024 * 1024):
    """Pallas implementation of ChannelGate2d.forward(x).

    Args:
      x:     (B, C, H, W)
      fc1_w: (mid, C)   1x1-conv weight of fc1 (kernel dims squeezed)
      fc1_b: (mid,)
      fc2_w: (C, mid)   1x1-conv weight of fc2
      fc2_b: (C,)
    """
    B, C, H, W = x.shape
    mid = fc1_w.shape[0]
    HW = H * W
    assert HW % 128 == 0, "H*W must be lane-aligned (multiple of 128)"

    itemsize = jnp.dtype(x.dtype).itemsize
    slab_bytes = C * HW * itemsize

    # ---- Batch tile TB: aim for ~target_block_bytes per step, keep >=2 grid
    # steps when B allows (megacore), and make TB divide B (no partial blocks).
    tb = max(1, min(B, target_block_bytes // max(slab_bytes, 1)))
    if B >= 2:
        tb = min(tb, pl.cdiv(B, 2))
    while B % tb:
        tb -= 1
    block_bytes = tb * slab_bytes

    # ---- Explicit VMEM budget: double-buffered input + output blocks plus
    # headroom for the tiny weights/gate scratch.
    vmem_needed = 4 * block_bytes + (2 << 20)
    assert vmem_needed <= 48 * 1024 * 1024, (
        "per-step block too large for v7x VMEM (64 MiB); shrink "
        "target_block_bytes or use a spatially tiled path")
    # TODO(synk): two-phase HW-tiled fallback (accumulate squeeze over HW
    # tiles, then re-stream tiles for the excite) for slabs where even TB=1
    # exceeds the v7x budget.
    vmem_limit = int(min(64 * 1024 * 1024, max(16 * 1024 * 1024, vmem_needed)))

    x3 = x.reshape(B, C, HW)                       # contiguous reshape: free
    w1t = jnp.transpose(fc1_w).reshape(C, mid)     # pre-transposed fc1 weight
    b1r = fc1_b.reshape(1, mid)
    w2r = fc2_w.reshape(C, mid)
    b2r = fc2_b.reshape(1, C)

    kernel = functools.partial(_channel_gate_kernel, inv_hw=1.0 / HW)

    cost = pl.CostEstimate(
        flops=int(5 * B * C * HW + 4 * B * C * mid),
        transcendentals=int(B * C),
        bytes_accessed=int(2 * B * C * HW * itemsize),
    )

    out = pl.pallas_call(
        kernel,
        out_shape=jax.ShapeDtypeStruct((B, C, HW), x.dtype),
        grid_spec=pltpu.PrefetchScalarGridSpec(
            num_scalar_prefetch=0,
            grid=(B // tb,),
            in_specs=[
                pl.BlockSpec((tb, C, HW), lambda b: (b, 0, 0)),
                pl.BlockSpec((C, mid), lambda b: (0, 0)),
                pl.BlockSpec((1, mid), lambda b: (0, 0)),
                pl.BlockSpec((C, mid), lambda b: (0, 0)),
                pl.BlockSpec((1, C), lambda b: (0, 0)),
            ],
            out_specs=pl.BlockSpec((tb, C, HW), lambda b: (b, 0, 0)),
        ),
        compiler_params=pltpu.CompilerParams(
            dimension_semantics=("parallel",),
            vmem_limit_bytes=vmem_limit),
        cost_estimate=cost,
        # input_output_aliases={0: 0} could be added when callers donate x.
    )(x3, w1t, b1r, w2r, b2r)

    return out.reshape(B, C, H, W)


def channel_gate_ref(x, fc1_w, fc1_b, fc2_w, fc2_b):
    """Pure-JAX reference (matches the PyTorch module)."""
    xf = x.astype(jnp.float32)
    s = jnp.mean(xf, axis=(2, 3))                               # (B, C)
    h = jnp.maximum(s @ fc1_w.astype(jnp.float32).T
                    + fc1_b.astype(jnp.float32), 0.0)           # (B, mid)
    g = jax.nn.sigmoid(h @ fc2_w.astype(jnp.float32).T
                       + fc2_b.astype(jnp.float32))             # (B, C)
    return (xf * g[:, :, None, None]).astype(x.dtype)


if __name__ == "__main__":
    key = jax.random.PRNGKey(0)
    k1, k2, k3, k4, k5 = jax.random.split(key, 5)

    # Small shapes consistent with the module: B=2, C=4, H=W=16, reduction=2.
    B, C, H, W = 2, 4, 16, 16
    reduction = 2
    mid = C // reduction

    x = jax.random.normal(k1, (B, C, H, W), dtype=jnp.float32)
    fc1_w = jax.random.normal(k2, (mid, C), dtype=jnp.float32) * 0.5
    fc1_b = jax.random.normal(k3, (mid,), dtype=jnp.float32) * 0.1
    fc2_w = jax.random.normal(k4, (C, mid), dtype=jnp.float32) * 0.5
    fc2_b = jax.random.normal(k5, (C,), dtype=jnp.float32) * 0.1

    out = channel_gate_2d(x, fc1_w, fc1_b, fc2_w, fc2_b)
    out = jax.block_until_ready(out)

    ref = channel_gate_ref(x, fc1_w, fc1_b, fc2_w, fc2_b)
    assert out.shape == ref.shape, (out.shape, ref.shape)
    assert jnp.allclose(out, ref, rtol=1e-5, atol=1e-5), (
        float(jnp.max(jnp.abs(out - ref))))

    print("KERNEL_OK")
</pallas_src>

<mosaic_0001>
module attributes {stable_mosaic.version = 11 : i64} {
  func.func @_channel_gate_kernel(%arg0: i32, %arg1: memref<1x4x256xf32, #tpu.memory_space<vmem>>, %arg2: memref<4x2xf32, #tpu.memory_space<vmem>>, %arg3: memref<1x2xf32, #tpu.memory_space<vmem>>, %arg4: memref<4x2xf32, #tpu.memory_space<vmem>>, %arg5: memref<1x4xf32, #tpu.memory_space<vmem>>, %arg6: memref<1x4x256xf32, #tpu.memory_space<vmem>>) attributes {dimension_semantics = [#tpu.dimension_semantics<parallel>], iteration_bounds = array<i64: 2>, scalar_prefetch = 0 : i64, scratch_operands = 0 : i64, tpu.core_type = #tpu.core_type<tc>, window_params = [{transform_indices = @transform_0, window_bounds = array<i64: 1, 4, 256>}, {pipeline_mode = #tpu.pipeline_mode<synchronous>, transform_indices = @transform_1, window_bounds = array<i64: 4, 2>}, {pipeline_mode = #tpu.pipeline_mode<synchronous>, transform_indices = @transform_2, window_bounds = array<i64: 1, 2>}, {pipeline_mode = #tpu.pipeline_mode<synchronous>, transform_indices = @transform_3, window_bounds = array<i64: 4, 2>}, {pipeline_mode = #tpu.pipeline_mode<synchronous>, transform_indices = @transform_4, window_bounds = array<i64: 1, 4>}, {transform_indices = @transform_5, window_bounds = array<i64: 1, 4, 256>}]} {
    %c0 = arith.constant 0 : index
    %c0_0 = arith.constant 0 : index
    %c0_1 = arith.constant 0 : index
    %0 = vector.load %arg1[%c0, %c0_0, %c0_1] : memref<1x4x256xf32, #tpu.memory_space<vmem>>, vector<1x4x256xf32>
    %cst = arith.constant dense<0.000000e+00> : vector<1x4xf32>
    %1 = vector.multi_reduction <add>, %0, %cst [2] : vector<1x4x256xf32> to vector<1x4xf32>
    %cst_2 = arith.constant 3.906250e-03 : f32
    %2 = vector.broadcast %cst_2 : f32 to vector<1x4xf32>
    %3 = arith.mulf %1, %2 : vector<1x4xf32>
    %c0_3 = arith.constant 0 : index
    %c0_4 = arith.constant 0 : index
    %4 = vector.load %arg2[%c0_3, %c0_4] : memref<4x2xf32, #tpu.memory_space<vmem>>, vector<4x2xf32>
    %c0_5 = arith.constant 0 : index
    %c0_6 = arith.constant 0 : index
    %5 = vector.load %arg4[%c0_5, %c0_6] : memref<4x2xf32, #tpu.memory_space<vmem>>, vector<4x2xf32>
    %c0_7 = arith.constant 0 : index
    %c0_8 = arith.constant 0 : index
    %6 = vector.load %arg3[%c0_7, %c0_8] : memref<1x2xf32, #tpu.memory_space<vmem>>, vector<1x2xf32>
    %c0_9 = arith.constant 0 : index
    %c0_10 = arith.constant 0 : index
    %7 = vector.load %arg5[%c0_9, %c0_10] : memref<1x4xf32, #tpu.memory_space<vmem>>, vector<1x4xf32>
    %8 = vector.shape_cast %3 : vector<1x4xf32> to vector<1x4x1xf32>
    %9 = vector.shape_cast %4 : vector<4x2xf32> to vector<1x4x2xf32>
    %10 = vector.broadcast %8 : vector<1x4x1xf32> to vector<1x4x2xf32>
    %11 = arith.mulf %10, %9 : vector<1x4x2xf32>
    %cst_11 = arith.constant dense<0.000000e+00> : vector<1x2xf32>
    %12 = vector.multi_reduction <add>, %11, %cst_11 [1] : vector<1x4x2xf32> to vector<1x2xf32>
    %13 = arith.addf %12, %6 : vector<1x2xf32>
    %cst_12 = arith.constant 0.000000e+00 : f32
    %14 = vector.broadcast %cst_12 : f32 to vector<1x2xf32>
    %15 = arith.maximumf %13, %14 : vector<1x2xf32>
    %16 = vector.shape_cast %15 : vector<1x2xf32> to vector<1x1x2xf32>
    %17 = vector.shape_cast %5 : vector<4x2xf32> to vector<1x4x2xf32>
    %18 = vector.broadcast %16 : vector<1x1x2xf32> to vector<1x4x2xf32>
    %19 = arith.mulf %18, %17 : vector<1x4x2xf32>
    %cst_13 = arith.constant dense<0.000000e+00> : vector<1x4xf32>
    %20 = vector.multi_reduction <add>, %19, %cst_13 [2] : vector<1x4x2xf32> to vector<1x4xf32>
    %21 = arith.addf %20, %7 : vector<1x4xf32>
    %22 = arith.negf %21 : vector<1x4xf32>
    %23 = math.exp %22 : vector<1x4xf32>
    %cst_14 = arith.constant 1.000000e+00 : f32
    %24 = vector.broadcast %cst_14 : f32 to vector<1x4xf32>
    %25 = arith.addf %24, %23 : vector<1x4xf32>
    %26 = arith.divf %24, %25 : vector<1x4xf32>
    %27 = vector.shape_cast %26 : vector<1x4xf32> to vector<1x4x1xf32>
    %c0_15 = arith.constant 0 : index
    %c0_16 = arith.constant 0 : index
    %c0_17 = arith.constant 0 : index
    %28 = vector.load %arg1[%c0_15, %c0_16, %c0_17] : memref<1x4x256xf32, #tpu.memory_space<vmem>>, vector<1x4x256xf32>
    %29 = vector.broadcast %27 : vector<1x4x1xf32> to vector<1x4x256xf32>
    %30 = arith.mulf %28, %29 : vector<1x4x256xf32>
    %c0_18 = arith.constant 0 : index
    %c0_19 = arith.constant 0 : index
    %c0_20 = arith.constant 0 : index
    %31 = vector.load %arg6[%c0_18, %c0_19, %c0_20] : memref<1x4x256xf32, #tpu.memory_space<vmem>>, vector<1x4x256xf32>
    tpu.vector_store %arg6[%c0_18, %c0_19, %c0_20], %30 {strides = array<i32>} : memref<1x4x256xf32, #tpu.memory_space<vmem>>, vector<1x4x256xf32>,
    return
  }
  func.func @transform_0(%arg0: i32) -> (i32, i32, i32) {
    %c0_i32 = arith.constant 0 : i32
    %c0_i32_0 = arith.constant 0 : i32
    %c0_i32_1 = arith.constant 0 : i32
    return %arg0, %c0_i32, %c0_i32_0 : i32, i32, i32
  }
  func.func @transform_1(%arg0: i32) -> (i32, i32) {
    %c0_i32 = arith.constant 0 : i32
    %c0_i32_0 = arith.constant 0 : i32
    %c0_i32_1 = arith.constant 0 : i32
    return %c0_i32, %c0_i32_0 : i32, i32
  }
  func.func @transform_2(%arg0: i32) -> (i32, i32) {
    %c0_i32 = arith.constant 0 : i32
    %c0_i32_0 = arith.constant 0 : i32
    %c0_i32_1 = arith.constant 0 : i32
    return %c0_i32, %c0_i32_0 : i32, i32
  }
  func.func @transform_3(%arg0: i32) -> (i32, i32) {
    %c0_i32 = arith.constant 0 : i32
    %c0_i32_0 = arith.constant 0 : i32
    %c0_i32_1 = arith.constant 0 : i32
    return %c0_i32, %c0_i32_0 : i32, i32
  }
  func.func @transform_4(%arg0: i32) -> (i32, i32) {
    %c0_i32 = arith.constant 0 : i32
    %c0_i32_0 = arith.constant 0 : i32
    %c0_i32_1 = arith.constant 0 : i32
    return %c0_i32, %c0_i32_0 : i32, i32
  }
  func.func @transform_5(%arg0: i32) -> (i32, i32, i32) {
    %c0_i32 = arith.constant 0 : i32
    %c0_i32_0 = arith.constant 0 : i32
    %c0_i32_1 = arith.constant 0 : i32
    return %arg0, %c0_i32, %c0_i32_0 : i32, i32, i32
  }
}

</mosaic_0001>

<llo_original>
// kernel: tpu_custom_call.1
$region0: #{tpu_custom_call.1}
  #allocation0 [shape = 'u32[]', space=smem, size = 0x4, offset = 0x4, fixed_abs, tag = 'smem constant byte address 0x4 - core index']
  #allocation1 [shape = 'u32[144,128]{1,0:T(1,128)}', space=vmem, size = 0x12000, scoped, tag = 'internal scratch']
  %s0 = inlined_call_operand.hbm [shape: f32[2,4,256], index: 0, kind: input, shape index: {}]
  %s1 = inlined_call_operand.vmem [shape: f32[4,2], index: 1, kind: input, shape index: {}]
  %s2 = inlined_call_operand.vmem [shape: f32[1,2], index: 2, kind: input, shape index: {}]
  %s3 = inlined_call_operand.vmem [shape: f32[4,2], index: 3, kind: input, shape index: {}]
  %s4 = inlined_call_operand.vmem [shape: f32[1,4], index: 4, kind: input, shape index: {}]
  %s5 = inlined_call_operand.hbm [shape: f32[2,4,256], index: 5, kind: output, shape index: {}]
  %s6 = sld [smem:[#allocation0]]
  $region57: #{tpu_custom_call.1} parent=0
    _
  %s8 = ssub.s32 1, %s6
  %s9 = scalar_select 0, %s8, %s6
  $region1: #{tpu_custom_call.1} parent=0
    #allocation2 [shape = 'u8[8192]{0}', space=vmem, size = 0x2000, scoped, tag = 'input window, operand 0']
    #allocation3 [shape = 's32[2]{0}', space=sflag, size = 0x8, scoped, tag = 'scoped memory for tpu_custom_call.1']
    #allocation4 [shape = 's32[2]{0}', space=sflag, size = 0x8, scoped, tag = 'scoped memory for tpu_custom_call.1']
    #allocation5 [shape = 'u8[8192]{0}', space=vmem, size = 0x2000, scoped, tag = 'output window, operand 0']
    %10 = vsyncpa [#allocation3], 0
    %s11 = scalar_lea.sflag [#allocation3], 1
    %12 = vsyncpa %s11, 0
    %13 = vsyncpa [#allocation4], 0
    %s14 = scalar_lea.sflag [#allocation4], 1
    %15 = vsyncpa %s14, 0
    loop: start=0, step=1, limit=4
    $region2: #{tpu_custom_call.1} parent=1 // loop_pre_header
      _
    $region3: #{tpu_custom_call.1} parent=1 // loop_header
      %s17 = sphi 0, %s21
      %p18 = scmp.ge.s32.totalorder %s17, 4
      %s27 = sphi 0, %s29
      %s30 = sphi 0, %s27
      %s31 = sphi 0, %s30
      %s47 = sphi 0, %s31
      %s51 = sphi 0, %s51
      %s53 = sphi 0, %s51
      %s54 = sphi 0, %s53
      %s68 = sphi 0, %s54
      %s72 = sphi 0, %s72
      %s74 = sphi 0, %s72
      %s75 = sphi 0, %s74
      %s89 = sphi 0, %s75
      %s93 = sphi 0, %s93
      %s95 = sphi 0, %s93
      %s96 = sphi 0, %s95
      %s110 = sphi 0, %s96
      %s114 = sphi 0, %s114
      %s116 = sphi 0, %s114
      %s117 = sphi 0, %s116
      %s131 = sphi 0, %s117
      %s137 = sphi 0, %s139
      %s140 = sphi 0, %s137
      %s141 = sphi 0, %s140
      %s157 = sphi 0, %s141
    $region4: #{tpu_custom_call.1} parent=1 // loop_header_branch
      %20 = sbr.rel (%p18) target = $region8
    $region5: #{tpu_custom_call.1} parent=1 // loop_body
      %s22 = ssub.s32 %s17, 1
      %s23 = ssub.s32 %s17, 2
      %s24 = sadd.s32 %s17, 1
      %s25 = ssub.s32 %s17, %s24
      %p26 = scmp.eq.s32.totalorder %s25, 0
      %s28 = sadd.s32 %s27, 1
      %s29 = scalar_select %p26, %s27, %s28
      %p32 = pneg %p26
      %p33 = scmp.eq.s32.totalorder %s17, 1
      %p34 = por %p32, %p33
      %p35 = scmp.ne.s32.totalorder %s27, %s30
      %p36 = scmp.eq.s32.totalorder %s17, 0
      %p37 = por %p35, %p36
      %p38 = scmp.ne.s32.totalorder %s27, %s30
      %p39 = scmp.eq.s32.totalorder %s22, 1
      %p40 = por %p38, %p39
      %p41 = scmp.ne.s32.totalorder %s30, %s31
      %p42 = scmp.eq.s32.totalorder %s22, 0
      %p43 = por %p41, %p42
      %p44 = scmp.ne.s32.totalorder %s30, %s31
      %p45 = scmp.eq.s32.totalorder %s23, 1
      %p46 = por %p44, %p45
      %p48 = scmp.ne.s32.totalorder %s31, %s47
      %p49 = scmp.eq.s32.totalorder %s23, 0
      %p50 = por %p48, %p49
      %s52 = sadd.s32 %s51, 1
      %p55 = scmp.eq.s32.totalorder %s17, 1
      %p56 = scmp.ne.s32.totalorder %s51, %s53
      %p57 = scmp.eq.s32.totalorder %s17, 0
      %p58 = por %p56, %p57
      %p59 = scmp.ne.s32.totalorder %s51, %s53
      %p60 = scmp.eq.s32.totalorder %s22, 1
      %p61 = por %p59, %p60
      %p62 = scmp.ne.s32.totalorder %s53, %s54
      %p63 = scmp.eq.s32.totalorder %s22, 0
      %p64 = por %p62, %p63
      %p65 = scmp.ne.s32.totalorder %s53, %s54
      %p66 = scmp.eq.s32.totalorder %s23, 1
      %p67 = por %p65, %p66
      %p69 = scmp.ne.s32.totalorder %s54, %s68
      %p70 = scmp.eq.s32.totalorder %s23, 0
      %p71 = por %p69, %p70
      %s73 = sadd.s32 %s72, 1
      %p76 = scmp.eq.s32.totalorder %s17, 1
      %p77 = scmp.ne.s32.totalorder %s72, %s74
      %p78 = scmp.eq.s32.totalorder %s17, 0
      %p79 = por %p77, %p78
      %p80 = scmp.ne.s32.totalorder %s72, %s74
      %p81 = scmp.eq.s32.totalorder %s22, 1
      %p82 = por %p80, %p81
      %p83 = scmp.ne.s32.totalorder %s74, %s75
      %p84 = scmp.eq.s32.totalorder %s22, 0
      %p85 = por %p83, %p84
      %p86 = scmp.ne.s32.totalorder %s74, %s75
      %p87 = scmp.eq.s32.totalorder %s23, 1
      %p88 = por %p86, %p87
      %p90 = scmp.ne.s32.totalorder %s75, %s89
      %p91 = scmp.eq.s32.totalorder %s23, 0
      %p92 = por %p90, %p91
      %s94 = sadd.s32 %s93, 1
      %p97 = scmp.eq.s32.totalorder %s17, 1
      %p98 = scmp.ne.s32.totalorder %s93, %s95
      %p99 = scmp.eq.s32.totalorder %s17, 0
      %p100 = por %p98, %p99
      %p101 = scmp.ne.s32.totalorder %s93, %s95
      %p102 = scmp.eq.s32.totalorder %s22, 1
      %p103 = por %p101, %p102
      %p104 = scmp.ne.s32.totalorder %s95, %s96
      %p105 = scmp.eq.s32.totalorder %s22, 0
      %p106 = por %p104, %p105
      %p107 = scmp.ne.s32.totalorder %s95, %s96
      %p108 = scmp.eq.s32.totalorder %s23, 1
      %p109 = por %p107, %p108
      %p111 = scmp.ne.s32.totalorder %s96, %s110
      %p112 = scmp.eq.s32.totalorder %s23, 0
      %p113 = por %p111, %p112
      %s115 = sadd.s32 %s114, 1
      %p118 = scmp.eq.s32.totalorder %s17, 1
      %p119 = scmp.ne.s32.totalorder %s114, %s116
      %p120 = scmp.eq.s32.totalorder %s17, 0
      %p121 = por %p119, %p120
      %p122 = scmp.ne.s32.totalorder %s114, %s116
      %p123 = scmp.eq.s32.totalorder %s22, 1
      %p124 = por %p122, %p123
      %p125 = scmp.ne.s32.totalorder %s116, %s117
      %p126 = scmp.eq.s32.totalorder %s22, 0
      %p127 = por %p125, %p126
      %p128 = scmp.ne.s32.totalorder %s116, %s117
      %p129 = scmp.eq.s32.totalorder %s23, 1
      %p130 = por %p128, %p129
      %p132 = scmp.ne.s32.totalorder %s117, %s131
      %p133 = scmp.eq.s32.totalorder %s23, 0
      %p134 = por %p132, %p133
      %s135 = ssub.s32 %s17, %s24
      %p136 = scmp.eq.s32.totalorder %s135, 0
      %s138 = sadd.s32 %s137, 1
      %s139 = scalar_select %p136, %s137, %s138
      %p142 = pneg %p136
      %p143 = scmp.eq.s32.totalorder %s17, 1
      %p144 = por %p142, %p143
      %p145 = scmp.ne.s32.totalorder %s137, %s140
      %p146 = scmp.eq.s32.totalorder %s17, 0
      %p147 = por %p145, %p146
      %p148 = scmp.ne.s32.totalorder %s137, %s140
      %p149 = scmp.eq.s32.totalorder %s22, 1
      %p150 = por %p148, %p149
      %p151 = scmp.ne.s32.totalorder %s140, %s141
      %p152 = scmp.eq.s32.totalorder %s22, 0
      %p153 = por %p151, %p152
      %p154 = scmp.ne.s32.totalorder %s140, %s141
      %p155 = scmp.eq.s32.totalorder %s23, 1
      %p156 = por %p154, %p155
      %p158 = scmp.ne.s32.totalorder %s141, %s157
      %p159 = scmp.eq.s32.totalorder %s23, 0
      %p160 = por %p158, %p159
      %p161 = scmp.le.s32.totalorder 1, %s17
      %p162 = scmp.lt.s32.totalorder %s17, 3
      %p163 = pnand %p161, %p162
      %p164 = pneg %p163
      // Predicated region
      $region9: #{tpu_custom_call.1} parent=5 // pred_check
        _
      $region10: #{tpu_custom_call.1} parent=5 // pred_check_branch
        %166 = sbr.rel (%p163) target = $region12
      $region11: #{tpu_custom_call.1} parent=5 // pred_region
        %s167 = ssub.s32 %s17, 1
        // Predicated region
        $region13: #{tpu_custom_call.1} parent=11 // pred_check
          %p168 = pneg %p64
        $region14: #{tpu_custom_call.1} parent=11 // pred_check_branch
          %170 = sbr.rel (%p168) target = $region16
        $region15: #{tpu_custom_call.1} parent=11 // pred_region
          _
        $region16: #{tpu_custom_call.1} parent=11 // pred_fallthru
          _
        // Predicated region
        $region17: #{tpu_custom_call.1} parent=11 // pred_check
          %p171 = pneg %p85
        $region18: #{tpu_custom_call.1} parent=11 // pred_check_branch
          %173 = sbr.rel (%p171) target = $region20
        $region19: #{tpu_custom_call.1} parent=11 // pred_region
          _
        $region20: #{tpu_custom_call.1} parent=11 // pred_fallthru
          _
        // Predicated region
        $region21: #{tpu_custom_call.1} parent=11 // pred_check
          %p174 = pneg %p106
        $region22: #{tpu_custom_call.1} parent=11 // pred_check_branch
          %176 = sbr.rel (%p174) target = $region24
        $region23: #{tpu_custom_call.1} parent=11 // pred_region
          _
        $region24: #{tpu_custom_call.1} parent=11 // pred_fallthru
          _
        // Predicated region
        $region25: #{tpu_custom_call.1} parent=11 // pred_check
          %p177 = pneg %p127
        $region26: #{tpu_custom_call.1} parent=11 // pred_check_branch
          %179 = sbr.rel (%p177) target = $region28
        $region27: #{tpu_custom_call.1} parent=11 // pred_region
          _
        $region28: #{tpu_custom_call.1} parent=11 // pred_fallthru
          _
      $region12: #{tpu_custom_call.1} parent=5 // pred_fallthru
        _
      %p180 = scmp.lt.s32.totalorder %s17, 2
      // Predicated region
      $region29: #{tpu_custom_call.1} parent=5 // pred_check
        %p181 = pneg %p180
      $region30: #{tpu_custom_call.1} parent=5 // pred_check_branch
        %183 = sbr.rel (%p181) target = $region32
      $region31: #{tpu_custom_call.1} parent=5 // pred_region
        // Predicated region
        $region33: #{tpu_custom_call.1} parent=31 // pred_check
          %p184 = pneg %p37
        $region34: #{tpu_custom_call.1} parent=31 // pred_check_branch
          %186 = sbr.rel (%p184) target = $region36
        $region35: #{tpu_custom_call.1} parent=31 // pred_region
          %s187 = sand.u32 %s27, 1
          %s188 = scalar_lea.sflag [#allocation3], %s187
          %s189 = sand.u32 %s27, 1
          %s190 = smul.addr %s189, 8
          %s191 = scalar_lea.vmem [#allocation2], %s190
          %s193 = ssub.s32 128, 128
          %194 = vsyncadd %s188, %s193
          %s195 = smul.addr %s17, 2
          %s196 = smul.addr %s195, 64
          %s197 = scalar_lea.hbm %s0, %s196
          %s199 = sshll.u32 %s191, 4
          %s200 = int_to_ptr.vmem [resolvable:$true] %s199
          %202 = dma.hbm_to_vmem [thread:$0]  %s197, 128, %s200, %s188
        $region36: #{tpu_custom_call.1} parent=31 // pred_fallthru
          _
      $region32: #{tpu_custom_call.1} parent=5 // pred_fallthru
        _
      %p203 = scmp.le.s32.totalorder 1, %s17
      %p204 = scmp.lt.s32.totalorder %s17, 3
      %p205 = pnand %p203, %p204
      %p206 = pneg %p205
      // Predicated region
      $region37: #{tpu_custom_call.1} parent=5 // pred_check
        _
      $region38: #{tpu_custom_call.1} parent=5 // pred_check_branch
        %208 = sbr.rel (%p205) target = $region40
      $region39: #{tpu_custom_call.1} parent=5 // pred_region
        %s209 = ssub.s32 %s17, 1
        %s210 = sand.u32 %s30, 1
        %s211 = scalar_lea.sflag [#allocation3], %s210
        %s212 = sand.u32 %s30, 1
        %s213 = smul.addr %s212, 8
        %s214 = scalar_lea.vmem [#allocation2], %s213
        // Predicated region
        $region41: #{tpu_custom_call.1} parent=39 // pred_check
          %p215 = pneg %p43
        $region42: #{tpu_custom_call.1} parent=39 // pred_check_branch
          %217 = sbr.rel (%p215) target = $region44
        $region43: #{tpu_custom_call.1} parent=39 // pred_region
          %218 = dma.done %s211, 128
        $region44: #{tpu_custom_call.1} parent=39 // pred_fallthru
          _
        %s219 = sand.u32 %s30, 1
        %s220 = scalar_lea.sflag [#allocation3], %s219
        %s221 = sand.u32 %s30, 1
        %s222 = smul.addr %s221, 8
        %s223 = scalar_lea.vmem [#allocation2], %s222
        %p224 = pneg %p43
        %p225 = pneg %p40
        %p226 = pneg %p64
        %p227 = pneg %p61
        %p228 = pneg %p85
        %p229 = pneg %p82
        %p230 = pneg %p106
        %p231 = pneg %p103
        %p232 = pneg %p127
        %p233 = pneg %p124
        %p234 = pneg %p153
        %p235 = pneg %p150
        %s236 = sand.u32 %s140, 1
        %s237 = scalar_lea.sflag [#allocation4], %s236
        %s238 = sand.u32 %s140, 1
        %s239 = smul.addr %s238, 8
        %s240 = scalar_lea.vmem [#allocation5], %s239
        %v241 = vld [vmem:[%s214] sm:$0xff]
        %v243 = vcombine.high %v241, %v241
        %vm245 = vcmask 1043456
        %v246 = vsel %vm245, %v241, 0.0
        %v247 = vsel %vm245, %v243, 0.0
        %v248 = vadd.f32 %v246, %v247
        %249 = vadd.xlane.f32.xlu0 %v248
        %v250 = vpop.xlane.xlu0 %249
        %v251 = vmul.f32 %v250, 0.00390625
        %v252 = vld [vmem:[%s1] sm:$0xf]
        %v253 = vld [vmem:[%s3] sm:$0xf]
        %v254 = vld [vmem:[%s2] sm:$0x1]
        %v255 = vld [vmem:[%s4] sm:$0x1]
        %v256 = vmul.f32 %v251, %v252
        %vm257 = vcmask 11264
        %v258 = vsel %vm257, %v256, 0.0
        %v259 = vrot.slane %v258, 4
        %v260 = vadd.f32 %v258, %v259
        %v261 = vrot.slane %v260, 2
        %v262 = vadd.f32 %v260, %v261
        %v263 = vrot.slane %v262, 1
        %v264 = vadd.f32 %v262, %v263
        %v265 = vadd.f32 %v264, %v254
        %v266 = vmax.f32 %v265, 0.0
        %v267 = vlaneseq
        %v268 = vshrl.u32 %v267, 7
        %v269 = vsub.s32 0, %v268
        %v270 = vrot.slane %v266, %v269
        %v271 = vmul.f32 %v270, %v253
        %v272 = vsel %vm257, %v271, 0.0
        %273 = vadd.xlane.f32.xlu0 %v272
        %v274 = vpop.xlane.xlu0 %273
        %v276 = vlaneseq
        %v277 = vshrl.u32 %v276, 7
        %v278 = vsub.s32 0, %v277
        %v279 = vrot.slane %v255, %v278
        %281 = vbcast.lane.b32.xlu0 %v279, 256
        %v282 = vpop.permute.xlu0 %281
        %v284 = vadd.f32 %v274, %v282
        %v285 = vxor.u32 %v284, 2147483648
        %v286 = vmul.f32 %v285, 1.442695
        %v287 = vpow.pop %v286
        %v288 = vadd.f32 %v287, 1.0
        %v289 = vrcp.pop %v288
        %v290 = vmul.f32 1.0, %v289
        %292 = vset.pattern.permute.xlu0 0
        %293 = vperm.xlu0 %292, %v290
        %v294 = vpop.permute.xlu0 %293
        %v296 = vunpack.c.l.s4 839922192
        %v297 = vunpack.c.0.s8 %v296
        %v298 = vlaneseq
        %v299 = vshrl.u32 %v298, 7
        %v300 = vsub.s32 %v297, %v299
        %v301 = vrot.slane %v294, %v300
        %v303 = vmul.f32 %v241, %v301
        %304 = vst [vmem:[%s240] sm:$0xff] %v303
        %s305 = sand.u32 %s140, 1
        %s306 = scalar_lea.sflag [#allocation4], %s305
        %s307 = sand.u32 %s140, 1
        %s308 = smul.addr %s307, 8
        %s309 = scalar_lea.vmem [#allocation5], %s308
        // Predicated region
        $region45: #{tpu_custom_call.1} parent=39 // pred_check
          %p310 = pneg %p150
        $region46: #{tpu_custom_call.1} parent=39 // pred_check_branch
          %312 = sbr.rel (%p310) target = $region48
        $region47: #{tpu_custom_call.1} parent=39 // pred_region
          %s314 = ssub.s32 128, 128
          %315 = vsyncadd %s306, %s314
          %s316 = smul.addr %s22, 2
          %s317 = smul.addr %s316, 64
          %s318 = scalar_lea.hbm %s5, %s317
          %s320 = sshll.u32 %s309, 4
          %s321 = int_to_ptr.vmem [resolvable:$true] %s320
          %323 = dma.vmem_to_hbm [thread:$0]  %s321, 128, %s318, %s306
        $region48: #{tpu_custom_call.1} parent=39 // pred_fallthru
          _
      $region40: #{tpu_custom_call.1} parent=5 // pred_fallthru
        _
      %p324 = scmp.le.s32.totalorder 2, %s17
      // Predicated region
      $region49: #{tpu_custom_call.1} parent=5 // pred_check
        %p325 = pneg %p324
      $region50: #{tpu_custom_call.1} parent=5 // pred_check_branch
        %327 = sbr.rel (%p325) target = $region52
      $region51: #{tpu_custom_call.1} parent=5 // pred_region
        %s328 = ssub.s32 %s17, 2
        // Predicated region
        $region53: #{tpu_custom_call.1} parent=51 // pred_check
          %p329 = pneg %p156
        $region54: #{tpu_custom_call.1} parent=51 // pred_check_branch
          %331 = sbr.rel (%p329) target = $region56
        $region55: #{tpu_custom_call.1} parent=51 // pred_region
          %s332 = sand.u32 %s141, 1
          %s333 = scalar_lea.sflag [#allocation4], %s332
          %s334 = sand.u32 %s141, 1
          %s335 = smul.addr %s334, 8
          %s336 = scalar_lea.vmem [#allocation5], %s335
          %337 = dma.done %s333, 128
        $region56: #{tpu_custom_call.1} parent=51 // pred_fallthru
          _
      $region52: #{tpu_custom_call.1} parent=5 // pred_fallthru
        _
    $region6: #{tpu_custom_call.1} parent=1 // loop_footer
      %s21 = sadd.s32 1, %s17
    $region7: #{tpu_custom_call.1} parent=1 // loop_footer_branch
      %16 = sbr.rel target = $region3
    $region8: #{tpu_custom_call.1} parent=1 // loop_exit
      _
    %338 = vsyncpa [#allocation3], 1
    %s339 = scalar_lea.sflag [#allocation3], 1
    %340 = vsyncpa %s339, 1
    %341 = vsyncpa [#allocation4], 1
    %s342 = scalar_lea.sflag [#allocation4], 1
    %343 = vsyncpa %s342, 1

</llo_original>
